<compile_context>
chip_gen: v6e
topology: v6e:2x2x1
jax: 0.10.0
libtpu: 0.0.40
codegen_flags: <defaults>
</compile_context>

<pallas_src>
import functools

import jax
import jax.numpy as jnp
from jax.experimental import pallas as pl
from jax.experimental.pallas import tpu as pltpu

_LANE = 128


def _round_up(x, m):
    return (x + m - 1) // m * m


def _tpu_budgets():
    """Generation-aware VMEM sizing + TensorCore count.

    v5e/v6e: 128 MiB physical VMEM, 1 TC  ->  96 MiB scoped limit, 88 MiB budget
    v7x    :  64 MiB physical VMEM, 2 TCs ->  48 MiB scoped limit, 40 MiB budget
    Unknown: conservative (v7x) numbers.
    """
    vmem_phys = 64 * 1024 * 1024
    try:
        info = pltpu.get_tpu_info()
        for name in ("vmem_capacity_bytes", "vmem_size_bytes", "vmem_bytes"):
            v = getattr(info, name, None)
            if v:
                vmem_phys = int(v)
                break
    except Exception:
        pass
    n_tc = 1
    try:
        kind = jax.devices()[0].device_kind.lower()
        if "v7" in kind or "7x" in kind:
            n_tc = 2
    except Exception:
        n_tc = 2  # be conservative about splitting if we can't tell
    limit = min((vmem_phys * 3) // 4, 96 * 1024 * 1024)
    budget = limit - 8 * 1024 * 1024
    return limit, budget, n_tc


_VMEM_LIMIT_BYTES, _BLOCK_BUDGET_BYTES, _NUM_TENSORCORES = _tpu_budgets()


def _vmem_bytes(bm, size_in, size_h, size_out, x_bytes, w_bytes, out_bytes):
    """Resident-VMEM estimate for one grid step (conservative)."""
    acts = 2 * bm * size_in * x_bytes + 2 * bm * size_out * out_bytes  # dbl-buffered x / out tiles
    wts = (size_in * size_h + size_h * size_out + size_in * size_out) * w_bytes
    wts += (size_h + size_out) * 4                                     # f32 biases
    tmp = bm * (size_in + size_h + size_out) * 4                       # f32 h / net / acc
    tmp += bm * (size_in + size_h) * w_bytes                           # low-precision matmul copies
    return acts + wts + tmp


# ----------------------------- Pallas kernels ------------------------------

def _resblock_kernel_shortcut(x_ref, w0_ref, b0_ref, w1_ref, b1_ref, ws_ref,
                              o_ref):
    """relu -> fc_0 -> relu -> fc_1, plus bias-free linear shortcut, fused."""
    x = x_ref[...]                                 # (bm, size_in), streamed dtype
    mm_dtype = w0_ref.dtype
    xm = x.astype(mm_dtype)
    # Shortcut matmul first; its MXU result seeds the f32 accumulator so MXU
    # outputs are consumed as they pop (keeps vreg pressure low at large bm).
    acc = jnp.dot(xm, ws_ref[...], preferred_element_type=jnp.float32)
    h = jnp.maximum(x, 0).astype(mm_dtype)         # relu in streamed precision, then cast (exact)
    net = jnp.dot(h, w0_ref[...],
                  preferred_element_type=jnp.float32) + b0_ref[...]    # f32 bias add
    net = jnp.maximum(net, 0.0).astype(mm_dtype)
    acc = acc + jnp.dot(net, w1_ref[...],
                        preferred_element_type=jnp.float32) + b1_ref[...]
    o_ref[...] = acc.astype(o_ref.dtype)


def _resblock_kernel_identity(x_ref, w0_ref, b0_ref, w1_ref, b1_ref, o_ref):
    """Same as above but the shortcut is identity (size_in == size_out)."""
    x = x_ref[...]
    mm_dtype = w0_ref.dtype
    h = jnp.maximum(x, 0).astype(mm_dtype)
    net = jnp.dot(h, w0_ref[...],
                  preferred_element_type=jnp.float32) + b0_ref[...]
    net = jnp.maximum(net, 0.0).astype(mm_dtype)
    dx = jnp.dot(net, w1_ref[...],
                 preferred_element_type=jnp.float32) + b1_ref[...]
    # Residual add in f32 with the streamed (un-rounded if f32) input.
    o_ref[...] = (x.astype(jnp.float32) + dx).astype(o_ref.dtype)


# ------------------------------ JAX wrapper --------------------------------

def prepare_params(params, matmul_dtype=jnp.bfloat16):
    """One-time prep: weights in the matmul dtype, biases as f32 (1, d).

    Call this once outside the training/inference loop so the f32->bf16 weight
    conversion (an extra HBM read+write) isn't paid on every call.
    """
    prepped = {
        "w0": jnp.asarray(params["w0"], matmul_dtype),
        "w1": jnp.asarray(params["w1"], matmul_dtype),
        "b0": jnp.reshape(jnp.asarray(params["b0"], jnp.float32), (1, -1)),
        "b1": jnp.reshape(jnp.asarray(params["b1"], jnp.float32), (1, -1)),
    }
    if "ws" in params:
        prepped["ws"] = jnp.asarray(params["ws"], matmul_dtype)
    return prepped


@functools.partial(jax.jit, static_argnames=("block_m", "matmul_dtype",
                                             "out_dtype", "lane_dense_out"))
def resnet_block_fc(x, params, block_m=1024, matmul_dtype=jnp.bfloat16,
                    out_dtype=None, lane_dense_out=True):
    """params: w0 (in,h), b0 (h,), b1 (out,), w1 (h,out), optional ws (in,out).

    For best bandwidth pass `x` already in the matmul dtype (bf16) and params
    through prepare_params(); all casts below become no-ops then.
    """
    n, size_in = x.shape
    size_h = params["w0"].shape[1]
    size_out = params["w1"].shape[1]
    has_shortcut = "ws" in params
    out_dtype = x.dtype if out_dtype is None else out_dtype

    # Lane-dense output: pad fc_1 / shortcut output columns to a multiple of
    # 128 so stores are full-lane vst instead of masked vst.msk.  Only needed
    # for the shortcut case; the identity case keeps size_out == size_in.
    if lane_dense_out and has_shortcut:
        size_out_p = _round_up(size_out, _LANE)
    else:
        size_out_p = size_out

    # Parameters in the matmul dtype (no-ops if prepare_params() was used).
    w0 = params["w0"].astype(matmul_dtype)
    w1 = params["w1"].astype(matmul_dtype)
    b0 = jnp.reshape(params["b0"], (1, size_h)).astype(jnp.float32)
    b1 = jnp.reshape(params["b1"], (1, size_out)).astype(jnp.float32)
    if size_out_p != size_out:
        w1 = jnp.pad(w1, ((0, 0), (0, size_out_p - size_out)))
        b1 = jnp.pad(b1, ((0, 0), (0, size_out_p - size_out)))
    ws = None
    if has_shortcut:
        ws = params["ws"].astype(matmul_dtype)
        if size_out_p != size_out:
            ws = jnp.pad(ws, ((0, 0), (0, size_out_p - size_out)))

    x_bytes = x.dtype.itemsize
    w_bytes = jnp.dtype(matmul_dtype).itemsize
    out_bytes = jnp.dtype(out_dtype).itemsize

    # --- pick the batch tile -------------------------------------------------
    # Big tiles amortize the ~0.35us/grid-step overhead; only split small N
    # across grid steps when the chip actually has >1 TensorCore (v7x), and
    # stay inside the generation-specific VMEM working budget.
    align = 16  # bf16 packs 2 rows per sublane; also a multiple of 8 for f32
    n_per_core = pl.cdiv(n, _NUM_TENSORCORES) if _NUM_TENSORCORES > 1 else n
    bm = min(block_m, _round_up(n_per_core, align))
    bm = max(align, _round_up(bm, align))
    while bm > align and _vmem_bytes(bm, size_in, size_h, size_out_p,
                                     x_bytes, w_bytes,
                                     out_bytes) > _BLOCK_BUDGET_BYTES:
        bm = max(align, _round_up(bm // 2, align))

    grid_len = pl.cdiv(n, bm)
    if _NUM_TENSORCORES > 1 and grid_len > 1 and grid_len % _NUM_TENSORCORES:
        # Keep the grid a multiple of the TC count so the "parallel" axis
        # balances across TensorCores on v7x.
        grid_len = _round_up(grid_len, _NUM_TENSORCORES)
        bm = max(align, _round_up(pl.cdiv(n, grid_len), align))
        grid_len = pl.cdiv(n, bm)
    grid = (grid_len,)

    # Weights/biases have a constant index_map -> single-buffer them.
    def _const_spec(shape):
        return pl.BlockSpec(shape, lambda i: (0, 0),
                            pipeline_mode=pl.Buffered(1))

    in_specs = [
        pl.BlockSpec((bm, size_in), lambda i: (i, 0)),        # x (double-buffered; ragged tail masked)
        _const_spec((size_in, size_h)),                       # w0
        _const_spec((1, size_h)),                             # b0
        _const_spec((size_h, size_out_p)),                    # w1
        _const_spec((1, size_out_p)),                         # b1
    ]
    args = [x, w0, b0, w1, b1]
    if has_shortcut:
        in_specs.append(_const_spec((size_in, size_out_p)))   # ws
        args.append(ws)
        kernel = _resblock_kernel_shortcut
    else:
        kernel = _resblock_kernel_identity

    out = pl.pallas_call(
        kernel,
        out_shape=jax.ShapeDtypeStruct((n, size_out_p), out_dtype),
        grid_spec=pltpu.PrefetchScalarGridSpec(
            num_scalar_prefetch=0,
            grid=grid,
            in_specs=in_specs,
            out_specs=pl.BlockSpec((bm, size_out_p), lambda i: (i, 0)),
        ),
        compiler_params=pltpu.CompilerParams(
            dimension_semantics=("parallel",),
            vmem_limit_bytes=_VMEM_LIMIT_BYTES),
    )(*args)

    return out[:, :size_out] if size_out_p != size_out else out


# ------------------------- parameter initialization -------------------------

def init_resnet_block_fc(key, size_in, size_out=None, size_h=None,
                         dtype=jnp.float32):
    """Mirrors ResnetBlockFC.__init__ (PyTorch nn.Linear default init,
    fc_1.weight zero-initialized).  Weights are stored transposed."""
    if size_out is None:
        size_out = size_in
    if size_h is None:
        size_h = min(size_in, size_out)

    k0, k1, k2, k3 = jax.random.split(key, 4)

    def _uniform(k, shape, fan_in):
        bound = 1.0 / (fan_in ** 0.5)
        return jax.random.uniform(k, shape, dtype, -bound, bound)

    params = {
        "w0": _uniform(k0, (size_in, size_h), size_in),
        "b0": _uniform(k1, (1, size_h), size_in),
        "w1": jnp.zeros((size_h, size_out), dtype),   # nn.init.zeros_(fc_1.weight)
        "b1": _uniform(k2, (1, size_out), size_h),
    }
    if size_in != size_out:
        params["ws"] = _uniform(k3, (size_in, size_out), size_in)
    return params


def resnet_block_fc_ref(x, params, matmul_dtype=jnp.float32):
    """Pure-JAX reference matching the PyTorch forward (optionally with the
    same mixed-precision matmuls as the kernel)."""
    md = matmul_dtype
    xm = x.astype(md)
    h = jnp.maximum(xm, 0)
    net = jnp.dot(h, params["w0"].astype(md),
                  preferred_element_type=jnp.float32) + params["b0"].astype(jnp.float32)
    net = jnp.maximum(net, 0.0).astype(md)
    dx = jnp.dot(net, params["w1"].astype(md),
                 preferred_element_type=jnp.float32) + params["b1"].astype(jnp.float32)
    if "ws" in params:
        x_s = jnp.dot(xm, params["ws"].astype(md),
                      preferred_element_type=jnp.float32)
    else:
        x_s = x.astype(jnp.float32)
    return (x_s + dx).astype(x.dtype)


# ---------------------------------- main ------------------------------------

if __name__ == "__main__":
    key = jax.random.PRNGKey(0)
    kx, kp, kp2, kw = jax.random.split(key, 4)

    # Small shapes; N deliberately NOT a multiple of the tile to exercise the
    # ragged (masked) tail path of the grid.
    N, size_in, size_out = 200, 32, 64          # size_h = min = 32
    x = jax.random.normal(kx, (N, size_in), jnp.float32)

    # case 1: size_in != size_out -> bias-free linear shortcut (bf16 matmuls)
    params = init_resnet_block_fc(kp, size_in, size_out)
    params_bf16 = prepare_params(params, jnp.bfloat16)   # one-time weight cast
    out = jax.block_until_ready(resnet_block_fc(x, params_bf16))
    assert out.shape == (N, size_out)
    ref_mixed = resnet_block_fc_ref(x, params, matmul_dtype=jnp.bfloat16)
    ref_full = resnet_block_fc_ref(x, params)
    assert jnp.allclose(out, ref_mixed, atol=1e-4, rtol=1e-4), "mixed-prec mismatch"
    assert jnp.allclose(out, ref_full, atol=5e-2, rtol=5e-2), "semantic mismatch"

    # full-f32 matmul path must match the PyTorch-semantics reference tightly
    out_f32 = jax.block_until_ready(
        resnet_block_fc(x, params, matmul_dtype=jnp.float32))
    assert jnp.allclose(out_f32, ref_full, atol=1e-4, rtol=1e-4)

    # non-zero fc_1 weight (default init zeroes it) to exercise the full path
    params_nz = dict(params)
    params_nz["w1"] = 0.1 * jax.random.normal(kw, params["w1"].shape, jnp.float32)
    out_nz = jax.block_until_ready(
        resnet_block_fc(x, params_nz, matmul_dtype=jnp.float32))
    ref_nz = resnet_block_fc_ref(x, params_nz)
    assert jnp.allclose(out_nz, ref_nz, atol=1e-3, rtol=1e-3), "nonzero-w1 mismatch"

    # bf16-streamed x (halves x/out HBM traffic on this mem-bound kernel)
    x_bf16 = x.astype(jnp.bfloat16)
    out_bf = jax.block_until_ready(resnet_block_fc(x_bf16, params_bf16))
    ref_bf = resnet_block_fc_ref(x_bf16.astype(jnp.float32), params,
                                 matmul_dtype=jnp.bfloat16)
    assert out_bf.dtype == jnp.bfloat16
    assert jnp.allclose(out_bf.astype(jnp.float32), ref_bf.astype(jnp.float32),
                        atol=3e-2, rtol=3e-2), "bf16-stream mismatch"

    # case 2: size_in == size_out -> identity shortcut
    params_id = init_resnet_block_fc(kp2, size_in)
    out_id = jax.block_until_ready(resnet_block_fc(x, prepare_params(params_id)))
    ref_id = resnet_block_fc_ref(x, params_id, matmul_dtype=jnp.bfloat16)
    assert jnp.allclose(out_id, ref_id, atol=1e-4, rtol=1e-4)

    print("KERNEL_OK")
</pallas_src>

<mosaic_0001>
module attributes {stable_mosaic.version = 11 : i64} {
  func.func @_resblock_kernel_shortcut(%arg0: i32, %arg1: memref<208x32xf32, #tpu.memory_space<vmem>>, %arg2: memref<32x32xbf16, #tpu.memory_space<vmem>>, %arg3: memref<1x32xf32, #tpu.memory_space<vmem>>, %arg4: memref<32x128xbf16, #tpu.memory_space<vmem>>, %arg5: memref<1x128xf32, #tpu.memory_space<vmem>>, %arg6: memref<32x128xbf16, #tpu.memory_space<vmem>>, %arg7: memref<208x128xf32, #tpu.memory_space<vmem>>) attributes {dimension_semantics = [#tpu.dimension_semantics<parallel>], iteration_bounds = array<i64: 1>, scalar_prefetch = 0 : i64, scratch_operands = 0 : i64, tpu.core_type = #tpu.core_type<tc>, window_params = [{transform_indices = @transform_0, window_bounds = array<i64: 208, 32>}, {pipeline_mode = #tpu.pipeline_mode<synchronous>, transform_indices = @transform_1, window_bounds = array<i64: 32, 32>}, {pipeline_mode = #tpu.pipeline_mode<synchronous>, transform_indices = @transform_2, window_bounds = array<i64: 1, 32>}, {pipeline_mode = #tpu.pipeline_mode<synchronous>, transform_indices = @transform_3, window_bounds = array<i64: 32, 128>}, {pipeline_mode = #tpu.pipeline_mode<synchronous>, transform_indices = @transform_4, window_bounds = array<i64: 1, 128>}, {pipeline_mode = #tpu.pipeline_mode<synchronous>, transform_indices = @transform_5, window_bounds = array<i64: 32, 128>}, {transform_indices = @transform_6, window_bounds = array<i64: 208, 128>}]} {
    %c0 = arith.constant 0 : index
    %c0_0 = arith.constant 0 : index
    %0 = vector.load %arg1[%c0, %c0_0] : memref<208x32xf32, #tpu.memory_space<vmem>>, vector<208x32xf32>
    %1 = arith.truncf %0 : vector<208x32xf32> to vector<208x32xbf16>
    %c0_1 = arith.constant 0 : index
    %c0_2 = arith.constant 0 : index
    %2 = vector.load %arg6[%c0_1, %c0_2] : memref<32x128xbf16, #tpu.memory_space<vmem>>, vector<32x128xbf16>
    %cst = arith.constant dense<0.000000e+00> : vector<208x128xf32>
    %3 = tpu.matmul %1, %2, %cst {dimension_numbers = #tpu.dot_dimension_numbers<[1], [0], [0], [1], [0, 0, 1, 1], [], []>} : vector<208x32xbf16>, vector<32x128xbf16>, vector<208x128xf32> -> vector<208x128xf32>
    %cst_3 = arith.constant 0.000000e+00 : f32
    %4 = vector.broadcast %cst_3 : f32 to vector<208x32xf32>
    %5 = arith.maximumf %0, %4 : vector<208x32xf32>
    %6 = arith.truncf %5 : vector<208x32xf32> to vector<208x32xbf16>
    %c0_4 = arith.constant 0 : index
    %c0_5 = arith.constant 0 : index
    %7 = vector.load %arg2[%c0_4, %c0_5] : memref<32x32xbf16, #tpu.memory_space<vmem>>, vector<32x32xbf16>
    %cst_6 = arith.constant dense<0.000000e+00> : vector<208x32xf32>
    %8 = tpu.matmul %6, %7, %cst_6 {dimension_numbers = #tpu.dot_dimension_numbers<[1], [0], [0], [1], [0, 0, 1, 1], [], []>} : vector<208x32xbf16>, vector<32x32xbf16>, vector<208x32xf32> -> vector<208x32xf32>
    %c0_7 = arith.constant 0 : index
    %c0_8 = arith.constant 0 : index
    %9 = vector.load %arg3[%c0_7, %c0_8] : memref<1x32xf32, #tpu.memory_space<vmem>>, vector<1x32xf32>
    %10 = vector.broadcast %9 : vector<1x32xf32> to vector<208x32xf32>
    %11 = arith.addf %8, %10 : vector<208x32xf32>
    %cst_9 = arith.constant 0.000000e+00 : f32
    %12 = vector.broadcast %cst_9 : f32 to vector<208x32xf32>
    %13 = arith.maximumf %11, %12 : vector<208x32xf32>
    %14 = arith.truncf %13 : vector<208x32xf32> to vector<208x32xbf16>
    %c0_10 = arith.constant 0 : index
    %c0_11 = arith.constant 0 : index
    %15 = vector.load %arg4[%c0_10, %c0_11] : memref<32x128xbf16, #tpu.memory_space<vmem>>, vector<32x128xbf16>
    %cst_12 = arith.constant dense<0.000000e+00> : vector<208x128xf32>
    %16 = tpu.matmul %14, %15, %cst_12 {dimension_numbers = #tpu.dot_dimension_numbers<[1], [0], [0], [1], [0, 0, 1, 1], [], []>} : vector<208x32xbf16>, vector<32x128xbf16>, vector<208x128xf32> -> vector<208x128xf32>
    %17 = arith.addf %3, %16 : vector<208x128xf32>
    %c0_13 = arith.constant 0 : index
    %c0_14 = arith.constant 0 : index
    %18 = vector.load %arg5[%c0_13, %c0_14] : memref<1x128xf32, #tpu.memory_space<vmem>>, vector<1x128xf32>
    %19 = vector.broadcast %18 : vector<1x128xf32> to vector<208x128xf32>
    %20 = arith.addf %17, %19 : vector<208x128xf32>
    %c0_15 = arith.constant 0 : index
    %c0_16 = arith.constant 0 : index
    %21 = vector.load %arg7[%c0_15, %c0_16] : memref<208x128xf32, #tpu.memory_space<vmem>>, vector<208x128xf32>
    tpu.vector_store %arg7[%c0_15, %c0_16], %20 {strides = array<i32>} : memref<208x128xf32, #tpu.memory_space<vmem>>, vector<208x128xf32>,
    return
  }
  func.func @transform_0(%arg0: i32) -> (i32, i32) {
    %c0_i32 = arith.constant 0 : i32
    %c0_i32_0 = arith.constant 0 : i32
    return %arg0, %c0_i32 : i32, i32
  }
  func.func @transform_1(%arg0: i32) -> (i32, i32) {
    %c0_i32 = arith.constant 0 : i32
    %c0_i32_0 = arith.constant 0 : i32
    %c0_i32_1 = arith.constant 0 : i32
    return %c0_i32, %c0_i32_0 : i32, i32
  }
  func.func @transform_2(%arg0: i32) -> (i32, i32) {
    %c0_i32 = arith.constant 0 : i32
    %c0_i32_0 = arith.constant 0 : i32
    %c0_i32_1 = arith.constant 0 : i32
    return %c0_i32, %c0_i32_0 : i32, i32
  }
  func.func @transform_3(%arg0: i32) -> (i32, i32) {
    %c0_i32 = arith.constant 0 : i32
    %c0_i32_0 = arith.constant 0 : i32
    %c0_i32_1 = arith.constant 0 : i32
    return %c0_i32, %c0_i32_0 : i32, i32
  }
  func.func @transform_4(%arg0: i32) -> (i32, i32) {
    %c0_i32 = arith.constant 0 : i32
    %c0_i32_0 = arith.constant 0 : i32
    %c0_i32_1 = arith.constant 0 : i32
    return %c0_i32, %c0_i32_0 : i32, i32
  }
  func.func @transform_5(%arg0: i32) -> (i32, i32) {
    %c0_i32 = arith.constant 0 : i32
    %c0_i32_0 = arith.constant 0 : i32
    %c0_i32_1 = arith.constant 0 : i32
    return %c0_i32, %c0_i32_0 : i32, i32
  }
  func.func @transform_6(%arg0: i32) -> (i32, i32) {
    %c0_i32 = arith.constant 0 : i32
    %c0_i32_0 = arith.constant 0 : i32
    return %arg0, %c0_i32 : i32, i32
  }
}

</mosaic_0001>

<llo_original>
// kernel: resnet_block_fc.1
$region0: #{resnet_block_fc.1}
  #allocation0 [shape = 'u32[]', space=smem, size = 0x4, offset = 0x4, fixed_abs, tag = 'smem constant byte address 0x4 - core index']
  #allocation1 [shape = 'u32[144,128]{1,0:T(1,128)}', space=vmem, size = 0x12000, scoped, tag = 'internal scratch']
  %s0 = inlined_call_operand.vmem [shape: f32[200,32], index: 0, kind: input, shape index: {}]
  %s1 = inlined_call_operand.vmem [shape: bf16[32,32], index: 1, kind: input, shape index: {}]
  %s2 = inlined_call_operand.vmem [shape: f32[1,32], index: 2, kind: input, shape index: {}]
  %s3 = inlined_call_operand.vmem [shape: bf16[32,128], index: 3, kind: input, shape index: {}]
  %s4 = inlined_call_operand.vmem [shape: f32[1,128], index: 4, kind: input, shape index: {}]
  %s5 = inlined_call_operand.vmem [shape: bf16[32,128], index: 5, kind: input, shape index: {}]
  %s6 = inlined_call_operand.vmem [shape: f32[200,128], index: 6, kind: output, shape index: {}]
  %s7 = sld [smem:[#allocation0]]
  $region68: #{resnet_block_fc.1} parent=0
    _
  %s9 = ssub.s32 1, %s7
  %s10 = scalar_select 0, %s9, %s7
  $region1: #{resnet_block_fc.1} parent=0
    #allocation2 [shape = 'u8[106496]{0}', space=vmem, size = 0x1a000, scoped, tag = 'output window, operand 0, single buffered']
    // Predicated region
    $region2: #{resnet_block_fc.1} parent=1 // pred_check
      _
    $region3: #{resnet_block_fc.1} parent=1 // pred_check_branch
      %12 = sbr.rel (0) target = $region5
    $region4: #{resnet_block_fc.1} parent=1 // pred_region
      _
    $region5: #{resnet_block_fc.1} parent=1 // pred_fallthru
      _
    // Predicated region
    $region6: #{resnet_block_fc.1} parent=1 // pred_check
      _
    $region7: #{resnet_block_fc.1} parent=1 // pred_check_branch
      %14 = sbr.rel (0) target = $region9
    $region8: #{resnet_block_fc.1} parent=1 // pred_region
      _
    $region9: #{resnet_block_fc.1} parent=1 // pred_fallthru
      _
    // Predicated region
    $region10: #{resnet_block_fc.1} parent=1 // pred_check
      _
    $region11: #{resnet_block_fc.1} parent=1 // pred_check_branch
      %16 = sbr.rel (0) target = $region13
    $region12: #{resnet_block_fc.1} parent=1 // pred_region
      _
    $region13: #{resnet_block_fc.1} parent=1 // pred_fallthru
      _
    // Predicated region
    $region14: #{resnet_block_fc.1} parent=1 // pred_check
      _
    $region15: #{resnet_block_fc.1} parent=1 // pred_check_branch
      %18 = sbr.rel (0) target = $region17
    $region16: #{resnet_block_fc.1} parent=1 // pred_region
      _
    $region17: #{resnet_block_fc.1} parent=1 // pred_fallthru
      _
    // Predicated region
    $region18: #{resnet_block_fc.1} parent=1 // pred_check
      _
    $region19: #{resnet_block_fc.1} parent=1 // pred_check_branch
      %20 = sbr.rel (0) target = $region21
    $region20: #{resnet_block_fc.1} parent=1 // pred_region
      _
    $region21: #{resnet_block_fc.1} parent=1 // pred_fallthru
      _
    // Predicated region
    $region22: #{resnet_block_fc.1} parent=1 // pred_check
      _
    $region23: #{resnet_block_fc.1} parent=1 // pred_check_branch
      %22 = sbr.rel (0) target = $region25
    $region24: #{resnet_block_fc.1} parent=1 // pred_region
      _
    $region25: #{resnet_block_fc.1} parent=1 // pred_fallthru
      _
    %v24 = vld [vmem:[%s0] sm:$0xff]
    %v25 = vld [vmem:[%s0 + $0x8] sm:$0xff]
    %v26 = vld [vmem:[%s0 + $0x10] sm:$0xff]
    %v27 = vld [vmem:[%s0 + $0x18] sm:$0xff]
    %v28 = vld [vmem:[%s0 + $0x20] sm:$0xff]
    %v29 = vld [vmem:[%s0 + $0x28] sm:$0xff]
    %v30 = vld [vmem:[%s0 + $0x30] sm:$0xff]
    %v31 = vld [vmem:[%s0 + $0x38] sm:$0xff]
    %v32 = vld [vmem:[%s0 + $0x40] sm:$0xff]
    %v33 = vld [vmem:[%s0 + $0x48] sm:$0xff]
    %v34 = vld [vmem:[%s0 + $0x50] sm:$0xff]
    %v35 = vld [vmem:[%s0 + $0x58] sm:$0xff]
    %v36 = vld [vmem:[%s0 + $0x60] sm:$0xff]
    %v37 = vld [vmem:[%s0 + $0x68] sm:$0xff]
    %v38 = vld [vmem:[%s0 + $0x70] sm:$0xff]
    %v39 = vld [vmem:[%s0 + $0x78] sm:$0xff]
    %v40 = vld [vmem:[%s0 + $0x80] sm:$0xff]
    %v41 = vld [vmem:[%s0 + $0x88] sm:$0xff]
    %v42 = vld [vmem:[%s0 + $0x90] sm:$0xff]
    %v43 = vld [vmem:[%s0 + $0x98] sm:$0xff]
    %v44 = vld [vmem:[%s0 + $0xa0] sm:$0xff]
    %v45 = vld [vmem:[%s0 + $0xa8] sm:$0xff]
    %v46 = vld [vmem:[%s0 + $0xb0] sm:$0xff]
    %v47 = vld [vmem:[%s0 + $0xb8] sm:$0xff]
    %v48 = vld [vmem:[%s0 + $0xc0] sm:$0xff]
    %v49 = vld [vmem:[%s0 + $0xc8] sm:$0xff]
    %v50 = vpack.c.bf16 %v25, %v24
    %v51 = vpack.c.bf16 %v27, %v26
    %v52 = vpack.c.bf16 %v29, %v28
    %v53 = vpack.c.bf16 %v31, %v30
    %v54 = vpack.c.bf16 %v33, %v32
    %v55 = vpack.c.bf16 %v35, %v34
    %v56 = vpack.c.bf16 %v37, %v36
    %v57 = vpack.c.bf16 %v39, %v38
    %v58 = vpack.c.bf16 %v41, %v40
    %v59 = vpack.c.bf16 %v43, %v42
    %v60 = vpack.c.bf16 %v45, %v44
    %v61 = vpack.c.bf16 %v47, %v46
    %v62 = vpack.c.bf16 %v49, %v48
    %v63 = vld [vmem:[%s5] sm:$0xf]
    %v64 = vld [vmem:[%s5 + $0x4] sm:$0xf]
    %v65 = vld [vmem:[%s5 + $0x8] sm:$0xf]
    %v66 = vld [vmem:[%s5 + $0xc] sm:$0xf]
    %v67 = vmax.f32 %v24, 0.0
    %v68 = vmax.f32 %v25, 0.0
    %v69 = vmax.f32 %v26, 0.0
    %v70 = vmax.f32 %v27, 0.0
    %v71 = vmax.f32 %v28, 0.0
    %v72 = vmax.f32 %v29, 0.0
    %v73 = vmax.f32 %v30, 0.0
    %v74 = vmax.f32 %v31, 0.0
    %v75 = vmax.f32 %v32, 0.0
    %v76 = vmax.f32 %v33, 0.0
    %v77 = vmax.f32 %v34, 0.0
    %v78 = vmax.f32 %v35, 0.0
    %v79 = vmax.f32 %v36, 0.0
    %v80 = vmax.f32 %v37, 0.0
    %v81 = vmax.f32 %v38, 0.0
    %v82 = vmax.f32 %v39, 0.0
    %v83 = vmax.f32 %v40, 0.0
    %v84 = vmax.f32 %v41, 0.0
    %v85 = vmax.f32 %v42, 0.0
    %v86 = vmax.f32 %v43, 0.0
    %v87 = vmax.f32 %v44, 0.0
    %v88 = vmax.f32 %v45, 0.0
    %v89 = vmax.f32 %v46, 0.0
    %v90 = vmax.f32 %v47, 0.0
    %v91 = vmax.f32 %v48, 0.0
    %v92 = vmax.f32 %v49, 0.0
    %v93 = vpack.c.bf16 %v68, %v67
    %v94 = vpack.c.bf16 %v70, %v69
    %v95 = vpack.c.bf16 %v72, %v71
    %v96 = vpack.c.bf16 %v74, %v73
    %v97 = vpack.c.bf16 %v76, %v75
    %v98 = vpack.c.bf16 %v78, %v77
    %v99 = vpack.c.bf16 %v80, %v79
    %v100 = vpack.c.bf16 %v82, %v81
    %v101 = vpack.c.bf16 %v84, %v83
    %v102 = vpack.c.bf16 %v86, %v85
    %v103 = vpack.c.bf16 %v88, %v87
    %v104 = vpack.c.bf16 %v90, %v89
    %v105 = vpack.c.bf16 %v92, %v91
    %v106 = vld [vmem:[%s1] sm:$0xf]
    %v107 = vld [vmem:[%s1 + $0x4] sm:$0xf]
    %v108 = vld [vmem:[%s1 + $0x8] sm:$0xf]
    %v109 = vld [vmem:[%s1 + $0xc] sm:$0xf]
    %v110 = vld [vmem:[%s2] sm:$0x1]
    %v112 = vlaneseq
    %v113 = vshrl.u32 %v112, 7
    %v114 = vsub.s32 0, %v113
    %v115 = vrot.slane %v110, %v114
    %v121 = vunpack.c.l.b16 %v106
    %v122 = vunpack.c.l.b16 %v107
    %v123 = vunpack.c.l.b16 %v108
    %v124 = vunpack.c.l.b16 %v109
    %v125 = vpack.c.b16 %v122, %v121
    %v126 = vpack.c.b16 %v124, %v123
    %vm129 = vcmask 261120
    %v131 = vsel %vm129, %v93, 0
    %v134 = vsel %vm129, %v94, 0
    %v137 = vsel %vm129, %v95, 0
    %v140 = vsel %vm129, %v96, 0
    %v143 = vsel %vm129, %v97, 0
    %v146 = vsel %vm129, %v98, 0
    %v149 = vsel %vm129, %v99, 0
    %v152 = vsel %vm129, %v100, 0
    %v155 = vsel %vm129, %v101, 0
    %v158 = vsel %vm129, %v102, 0
    %v161 = vsel %vm129, %v103, 0
    %v164 = vsel %vm129, %v104, 0
    %v167 = vsel %vm129, %v105, 0
    %169 = vmatprep.subr.bf16.mxu0 0
    %170 = vmatpush1.bf16.msra.mxu0 0
    %171 = vmatprep.subr.bf16.mxu0 0
    %172 = vmatpush1.bf16.msra.mxu0 0
    %173 = vmatprep.subr.bf16.mxu0 0
    %174 = vmatpush1.bf16.msra.mxu0 0
    %175 = vmatprep.subr.bf16.mxu0 0
    %176 = vmatpush1.bf16.msra.mxu0 0
    %177 = vmatprep.subr.bf16.mxu0 0
    %178 = vmatpush1.bf16.msra.mxu0 0
    %179 = vmatprep.subr.bf16.mxu0 0
    %180 = vmatpush1.bf16.msra.mxu0 0
    %181 = vmatprep.subr.bf16.mxu0 0
    %182 = vmatpush1.bf16.msra.mxu0 %v126
    %183 = vmatprep.subr.bf16.mxu0 0
    %184 = vmatpush1.bf16.msra.mxu0 %v125
    %185 = vmatprep.subr.bf16.mxu0 0
    %186 = vmatpush2.bf16.msra.mxu0 0
    %187 = vmatprep.subr.bf16.mxu0 0
    %188 = vmatpush2.bf16.msra.mxu0 0
    %189 = vmatprep.subr.bf16.mxu0 0
    %190 = vmatpush2.bf16.msra.mxu0 0
    %191 = vmatprep.subr.bf16.mxu0 0
    %192 = vmatpush2.bf16.msra.mxu0 0
    %193 = vmatprep.subr.bf16.mxu0 0
    %194 = vmatpush2.bf16.msra.mxu0 0
    %195 = vmatprep.subr.bf16.mxu0 0
    %196 = vmatpush2.bf16.msra.mxu0 0
    %197 = vmatprep.subr.bf16.mxu0 0
    %198 = vmatpush2.bf16.msra.mxu0 0
    %199 = vmatprep.subr.bf16.mxu0 0
    %200 = vmatpush2.bf16.msra.mxu0 0
    %201 = vmatprep.mubr.bf16.mxu0 0
    %202 = vmatmul.mubr.bf16.gmra.mxu0 %v131
    %v203 = vpop.f32.mrf.mxu0
    %v204 = vadd.f32 %v115, %v203
    %v205 = vpop.f32.mrf.mxu0
    %v206 = vpop.f32.mrf.mxu0
    %v207 = vadd.f32 %v115, %v206
    %v208 = vpop.f32.mrf.mxu0
    %209 = vmatprep.mubr.bf16.mxu0 0
    %210 = vmatmul.mubr.bf16.gmra.mxu0 %v134
    %v211 = vpop.f32.mrf.mxu0
    %v212 = vadd.f32 %v115, %v211
    %v213 = vpop.f32.mrf.mxu0
    %v214 = vpop.f32.mrf.mxu0
    %v215 = vadd.f32 %v115, %v214
    %v216 = vpop.f32.mrf.mxu0
    %217 = vmatprep.mubr.bf16.mxu0 0
    %218 = vmatmul.mubr.bf16.gmra.mxu0 %v137
    %v219 = vpop.f32.mrf.mxu0
    %v220 = vadd.f32 %v115, %v219
    %v221 = vpop.f32.mrf.mxu0
    %v222 = vpop.f32.mrf.mxu0
    %v223 = vadd.f32 %v115, %v222
    %v224 = vpop.f32.mrf.mxu0
    %225 = vmatprep.mubr.bf16.mxu0 0
    %226 = vmatmul.mubr.bf16.gmra.mxu0 %v140
    %v227 = vpop.f32.mrf.mxu0
    %v228 = vadd.f32 %v115, %v227
    %v229 = vpop.f32.mrf.mxu0
    %v230 = vpop.f32.mrf.mxu0
    %v231 = vadd.f32 %v115, %v230
    %v232 = vpop.f32.mrf.mxu0
    %233 = vmatprep.mubr.bf16.mxu0 0
    %234 = vmatmul.mubr.bf16.gmra.mxu0 %v143
    %v235 = vpop.f32.mrf.mxu0
    %v236 = vadd.f32 %v115, %v235
    %v237 = vpop.f32.mrf.mxu0
    %v238 = vpop.f32.mrf.mxu0
    %v239 = vadd.f32 %v115, %v238
    %v240 = vpop.f32.mrf.mxu0
    %241 = vmatprep.mubr.bf16.mxu0 0
    %242 = vmatmul.mubr.bf16.gmra.mxu0 %v146
    %v243 = vpop.f32.mrf.mxu0
    %v244 = vadd.f32 %v115, %v243
    %v245 = vpop.f32.mrf.mxu0
    %v246 = vpop.f32.mrf.mxu0
    %v247 = vadd.f32 %v115, %v246
    %v248 = vpop.f32.mrf.mxu0
    %249 = vmatprep.mubr.bf16.mxu0 0
    %250 = vmatmul.mubr.bf16.gmra.mxu0 %v149
    %v251 = vpop.f32.mrf.mxu0
    %v252 = vadd.f32 %v115, %v251
    %v253 = vpop.f32.mrf.mxu0
    %v254 = vpop.f32.mrf.mxu0
    %v255 = vadd.f32 %v115, %v254
    %v256 = vpop.f32.mrf.mxu0
    %257 = vmatprep.mubr.bf16.mxu0 0
    %258 = vmatmul.mubr.bf16.gmra.mxu0 %v152
    %v259 = vpop.f32.mrf.mxu0
    %v260 = vadd.f32 %v115, %v259
    %v261 = vpop.f32.mrf.mxu0
    %v262 = vpop.f32.mrf.mxu0
    %v263 = vadd.f32 %v115, %v262
    %v264 = vpop.f32.mrf.mxu0
    %265 = vmatprep.mubr.bf16.mxu0 0
    %266 = vmatmul.mubr.bf16.gmra.mxu0 %v155
    %v267 = vpop.f32.mrf.mxu0
    %v268 = vadd.f32 %v115, %v267
    %v269 = vpop.f32.mrf.mxu0
    %v270 = vpop.f32.mrf.mxu0
    %v271 = vadd.f32 %v115, %v270
    %v272 = vpop.f32.mrf.mxu0
    %273 = vmatprep.mubr.bf16.mxu0 0
    %274 = vmatmul.mubr.bf16.gmra.mxu0 %v158
    %v275 = vpop.f32.mrf.mxu0
    %v276 = vadd.f32 %v115, %v275
    %v277 = vpop.f32.mrf.mxu0
    %v278 = vpop.f32.mrf.mxu0
    %v279 = vadd.f32 %v115, %v278
    %v280 = vpop.f32.mrf.mxu0
    %281 = vmatprep.mubr.bf16.mxu0 0
    %282 = vmatmul.mubr.bf16.gmra.mxu0 %v161
    %v283 = vpop.f32.mrf.mxu0
    %v284 = vadd.f32 %v115, %v283
    %v285 = vpop.f32.mrf.mxu0
    %v286 = vpop.f32.mrf.mxu0
    %v287 = vadd.f32 %v115, %v286
    %v288 = vpop.f32.mrf.mxu0
    %289 = vmatprep.mubr.bf16.mxu0 0
    %290 = vmatmul.mubr.bf16.gmra.mxu0 %v164
    %v291 = vpop.f32.mrf.mxu0
    %v292 = vadd.f32 %v115, %v291
    %v293 = vpop.f32.mrf.mxu0
    %v294 = vpop.f32.mrf.mxu0
    %v295 = vadd.f32 %v115, %v294
    %v296 = vpop.f32.mrf.mxu0
    %297 = vmatprep.mubr.bf16.mxu0 0
    %298 = vmatmul.mubr.bf16.gmra.mxu0 %v167
    %v299 = vpop.f32.mrf.mxu0
    %v300 = vadd.f32 %v115, %v299
    %v301 = vpop.f32.mrf.mxu0
    %v302 = vpop.f32.mrf.mxu0
    %v303 = vadd.f32 %v115, %v302
    %v304 = vpop.f32.mrf.mxu0
    %305 = vdwg.mxu0
    %v306 = vmax.f32 %v204, 0.0
    %v307 = vmax.f32 %v207, 0.0
    %v308 = vmax.f32 %v212, 0.0
    %v309 = vmax.f32 %v215, 0.0
    %v310 = vmax.f32 %v220, 0.0
    %v311 = vmax.f32 %v223, 0.0
    %v312 = vmax.f32 %v228, 0.0
    %v313 = vmax.f32 %v231, 0.0
    %v314 = vmax.f32 %v236, 0.0
    %v315 = vmax.f32 %v239, 0.0
    %v316 = vmax.f32 %v244, 0.0
    %v317 = vmax.f32 %v247, 0.0
    %v318 = vmax.f32 %v252, 0.0
    %v319 = vmax.f32 %v255, 0.0
    %v320 = vmax.f32 %v260, 0.0
    %v321 = vmax.f32 %v263, 0.0
    %v322 = vmax.f32 %v268, 0.0
    %v323 = vmax.f32 %v271, 0.0
    %v324 = vmax.f32 %v276, 0.0
    %v325 = vmax.f32 %v279, 0.0
    %v326 = vmax.f32 %v284, 0.0
    %v327 = vmax.f32 %v287, 0.0
    %v328 = vmax.f32 %v292, 0.0
    %v329 = vmax.f32 %v295, 0.0
    %v330 = vmax.f32 %v300, 0.0
    %v331 = vmax.f32 %v303, 0.0
    %v332 = vpack.c.bf16 %v307, %v306
    %v333 = vpack.c.bf16 %v309, %v308
    %v334 = vpack.c.bf16 %v311, %v310
    %v335 = vpack.c.bf16 %v313, %v312
    %v336 = vpack.c.bf16 %v315, %v314
    %v337 = vpack.c.bf16 %v317, %v316
    %v338 = vpack.c.bf16 %v319, %v318
    %v339 = vpack.c.bf16 %v321, %v320
    %v340 = vpack.c.bf16 %v323, %v322
    %v341 = vpack.c.bf16 %v325, %v324
    %v342 = vpack.c.bf16 %v327, %v326
    %v343 = vpack.c.bf16 %v329, %v328
    %v344 = vpack.c.bf16 %v331, %v330
    %v345 = vld [vmem:[%s3] sm:$0xf]
    %v346 = vld [vmem:[%s3 + $0x4] sm:$0xf]
    %v347 = vld [vmem:[%s3 + $0x8] sm:$0xf]
    %v348 = vld [vmem:[%s3 + $0xc] sm:$0xf]
    %v353 = vunpack.c.l.b16 %v345
    %v354 = vunpack.c.l.b16 %v346
    %v355 = vunpack.c.l.b16 %v347
    %v356 = vunpack.c.l.b16 %v348
    %v357 = vpack.c.b16 %v354, %v353
    %v358 = vpack.c.b16 %v356, %v355
    %v362 = vsel %vm129, %v332, 0
    %v365 = vsel %vm129, %v333, 0
    %v368 = vsel %vm129, %v334, 0
    %v371 = vsel %vm129, %v335, 0
    %v374 = vsel %vm129, %v336, 0
    %v377 = vsel %vm129, %v337, 0
    %v380 = vsel %vm129, %v338, 0
    %v383 = vsel %vm129, %v339, 0
    %v386 = vsel %vm129, %v340, 0
    %v389 = vsel %vm129, %v341, 0
    %v392 = vsel %vm129, %v342, 0
    %v395 = vsel %vm129, %v343, 0
    %v398 = vsel %vm129, %v344, 0
    %400 = vmatprep.subr.bf16.mxu0 0
    %401 = vmatpush1.bf16.msra.mxu0 0
    %402 = vmatprep.subr.bf16.mxu0 0
    %403 = vmatpush1.bf16.msra.mxu0 0
    %404 = vmatprep.subr.bf16.mxu0 0
    %405 = vmatpush1.bf16.msra.mxu0 0
    %406 = vmatprep.subr.bf16.mxu0 0
    %407 = vmatpush1.bf16.msra.mxu0 0
    %408 = vmatprep.subr.bf16.mxu0 0
    %409 = vmatpush1.bf16.msra.mxu0 0
    %410 = vmatprep.subr.bf16.mxu0 0
    %411 = vmatpush1.bf16.msra.mxu0 0
    %412 = vmatprep.subr.bf16.mxu0 0
    %413 = vmatpush1.bf16.msra.mxu0 %v358
    %414 = vmatprep.subr.bf16.mxu0 0
    %415 = vmatpush1.bf16.msra.mxu0 %v357
    %416 = vmatprep.subr.bf16.mxu0 0
    %417 = vmatpush2.bf16.msra.mxu0 0
    %418 = vmatprep.subr.bf16.mxu0 0
    %419 = vmatpush2.bf16.msra.mxu0 0
    %420 = vmatprep.subr.bf16.mxu0 0
    %421 = vmatpush2.bf16.msra.mxu0 0
    %422 = vmatprep.subr.bf16.mxu0 0
    %423 = vmatpush2.bf16.msra.mxu0 0
    %424 = vmatprep.subr.bf16.mxu0 0
    %425 = vmatpush2.bf16.msra.mxu0 0
    %426 = vmatprep.subr.bf16.mxu0 0
    %427 = vmatpush2.bf16.msra.mxu0 0
    %428 = vmatprep.subr.bf16.mxu0 0
    %429 = vmatpush2.bf16.msra.mxu0 0
    %430 = vmatprep.subr.bf16.mxu0 0
    %431 = vmatpush2.bf16.msra.mxu0 0
    %432 = vmatprep.mubr.bf16.mxu0 0
    %433 = vmatmul.mubr.bf16.gmra.mxu0 %v362
    %v434 = vpop.f32.mrf.mxu0
    %v435 = vadd.f32 0.0, %v434
    %v436 = vpop.f32.mrf.mxu0
    %v437 = vpop.f32.mrf.mxu0
    %v438 = vadd.f32 0.0, %v437
    %v439 = vpop.f32.mrf.mxu0
    %440 = vmatprep.mubr.bf16.mxu0 0
    %441 = vmatmul.mubr.bf16.gmra.mxu0 %v365
    %v442 = vpop.f32.mrf.mxu0
    %v443 = vadd.f32 0.0, %v442
    %v444 = vpop.f32.mrf.mxu0
    %v445 = vpop.f32.mrf.mxu0
    %v446 = vadd.f32 0.0, %v445
    %v447 = vpop.f32.mrf.mxu0
    %448 = vmatprep.mubr.bf16.mxu0 0
    %449 = vmatmul.mubr.bf16.gmra.mxu0 %v368
    %v450 = vpop.f32.mrf.mxu0
    %v451 = vadd.f32 0.0, %v450
    %v452 = vpop.f32.mrf.mxu0
    %v453 = vpop.f32.mrf.mxu0
    %v454 = vadd.f32 0.0, %v453
    %v455 = vpop.f32.mrf.mxu0
    %456 = vmatprep.mubr.bf16.mxu0 0
    %457 = vmatmul.mubr.bf16.gmra.mxu0 %v371
    %v458 = vpop.f32.mrf.mxu0
    %v459 = vadd.f32 0.0, %v458
    %v460 = vpop.f32.mrf.mxu0
    %v461 = vpop.f32.mrf.mxu0
    %v462 = vadd.f32 0.0, %v461
    %v463 = vpop.f32.mrf.mxu0
    %464 = vmatprep.mubr.bf16.mxu0 0
    %465 = vmatmul.mubr.bf16.gmra.mxu0 %v374
    %v466 = vpop.f32.mrf.mxu0
    %v467 = vadd.f32 0.0, %v466
    %v468 = vpop.f32.mrf.mxu0
    %v469 = vpop.f32.mrf.mxu0
    %v470 = vadd.f32 0.0, %v469
    %v471 = vpop.f32.mrf.mxu0
    %472 = vmatprep.mubr.bf16.mxu0 0
    %473 = vmatmul.mubr.bf16.gmra.mxu0 %v377
    %v474 = vpop.f32.mrf.mxu0
    %v475 = vadd.f32 0.0, %v474
    %v476 = vpop.f32.mrf.mxu0
    %v477 = vpop.f32.mrf.mxu0
    %v478 = vadd.f32 0.0, %v477
    %v479 = vpop.f32.mrf.mxu0
    %480 = vmatprep.mubr.bf16.mxu0 0
    %481 = vmatmul.mubr.bf16.gmra.mxu0 %v380
    %v482 = vpop.f32.mrf.mxu0
    %v483 = vadd.f32 0.0, %v482
    %v484 = vpop.f32.mrf.mxu0
    %v485 = vpop.f32.mrf.mxu0
    %v486 = vadd.f32 0.0, %v485
    %v487 = vpop.f32.mrf.mxu0
    %488 = vmatprep.mubr.bf16.mxu0 0
    %489 = vmatmul.mubr.bf16.gmra.mxu0 %v383
    %v490 = vpop.f32.mrf.mxu0
    %v491 = vadd.f32 0.0, %v490
    %v492 = vpop.f32.mrf.mxu0
    %v493 = vpop.f32.mrf.mxu0
    %v494 = vadd.f32 0.0, %v493
    %v495 = vpop.f32.mrf.mxu0
    %496 = vmatprep.mubr.bf16.mxu0 0
    %497 = vmatmul.mubr.bf16.gmra.mxu0 %v386
    %v498 = vpop.f32.mrf.mxu0
    %v499 = vadd.f32 0.0, %v498
    %v500 = vpop.f32.mrf.mxu0
    %v501 = vpop.f32.mrf.mxu0
    %v502 = vadd.f32 0.0, %v501
    %v503 = vpop.f32.mrf.mxu0
    %504 = vmatprep.mubr.bf16.mxu0 0
    %505 = vmatmul.mubr.bf16.gmra.mxu0 %v389
    %v506 = vpop.f32.mrf.mxu0
    %v507 = vadd.f32 0.0, %v506
    %v508 = vpop.f32.mrf.mxu0
    %v509 = vpop.f32.mrf.mxu0
    %v510 = vadd.f32 0.0, %v509
    %v511 = vpop.f32.mrf.mxu0
    %512 = vmatprep.mubr.bf16.mxu0 0
    %513 = vmatmul.mubr.bf16.gmra.mxu0 %v392
    %v514 = vpop.f32.mrf.mxu0
    %v515 = vadd.f32 0.0, %v514
    %v516 = vpop.f32.mrf.mxu0
    %v517 = vpop.f32.mrf.mxu0
    %v518 = vadd.f32 0.0, %v517
    %v519 = vpop.f32.mrf.mxu0
    %520 = vmatprep.mubr.bf16.mxu0 0
    %521 = vmatmul.mubr.bf16.gmra.mxu0 %v395
    %v522 = vpop.f32.mrf.mxu0
    %v523 = vadd.f32 0.0, %v522
    %v524 = vpop.f32.mrf.mxu0
    %v525 = vpop.f32.mrf.mxu0
    %v526 = vadd.f32 0.0, %v525
    %v527 = vpop.f32.mrf.mxu0
    %528 = vmatprep.mubr.bf16.mxu0 0
    %529 = vmatmul.mubr.bf16.gmra.mxu0 %v398
    %v530 = vpop.f32.mrf.mxu0
    %v531 = vadd.f32 0.0, %v530
    %v532 = vpop.f32.mrf.mxu0
    %v533 = vpop.f32.mrf.mxu0
    %v534 = vadd.f32 0.0, %v533
    %v535 = vpop.f32.mrf.mxu0
    %536 = vdwg.mxu0
    %v541 = vunpack.c.l.b16 %v63
    %v542 = vunpack.c.l.b16 %v64
    %v543 = vunpack.c.l.b16 %v65
    %v544 = vunpack.c.l.b16 %v66
    %v545 = vpack.c.b16 %v542, %v541
    %v546 = vpack.c.b16 %v544, %v543
    %v550 = vsel %vm129, %v50, 0
    %v553 = vsel %vm129, %v51, 0
    %v556 = vsel %vm129, %v52, 0
    %v559 = vsel %vm129, %v53, 0
    %v562 = vsel %vm129, %v54, 0
    %v565 = vsel %vm129, %v55, 0
    %v568 = vsel %vm129, %v56, 0
    %v571 = vsel %vm129, %v57, 0
    %v574 = vsel %vm129, %v58, 0
    %v577 = vsel %vm129, %v59, 0
    %v580 = vsel %vm129, %v60, 0
    %v583 = vsel %vm129, %v61, 0
    %v586 = vsel %vm129, %v62, 0
    %588 = vmatprep.subr.bf16.mxu0 0
    %589 = vmatpush1.bf16.msra.mxu0 0
    %590 = vmatprep.subr.bf16.mxu0 0
    %591 = vmatpush1.bf16.msra.mxu0 0
    %592 = vmatprep.subr.bf16.mxu0 0
    %593 = vmatpush1.bf16.msra.mxu0 0
    %594 = vmatprep.subr.bf16.mxu0 0
    %595 = vmatpush1.bf16.msra.mxu0 0
    %596 = vmatprep.subr.bf16.mxu0 0
    %597 = vmatpush1.bf16.msra.mxu0 0
    %598 = vmatprep.subr.bf16.mxu0 0
    %599 = vmatpush1.bf16.msra.mxu0 0
    %600 = vmatprep.subr.bf16.mxu0 0
    %601 = vmatpush1.bf16.msra.mxu0 %v546
    %602 = vmatprep.subr.bf16.mxu0 0
    %603 = vmatpush1.bf16.msra.mxu0 %v545
    %604 = vmatprep.subr.bf16.mxu0 0
    %605 = vmatpush2.bf16.msra.mxu0 0
    %606 = vmatprep.subr.bf16.mxu0 0
    %607 = vmatpush2.bf16.msra.mxu0 0
    %608 = vmatprep.subr.bf16.mxu0 0
    %609 = vmatpush2.bf16.msra.mxu0 0
    %610 = vmatprep.subr.bf16.mxu0 0
    %611 = vmatpush2.bf16.msra.mxu0 0
    %612 = vmatprep.subr.bf16.mxu0 0
    %613 = vmatpush2.bf16.msra.mxu0 0
    %614 = vmatprep.subr.bf16.mxu0 0
    %615 = vmatpush2.bf16.msra.mxu0 0
    %616 = vmatprep.subr.bf16.mxu0 0
    %617 = vmatpush2.bf16.msra.mxu0 0
    %618 = vmatprep.subr.bf16.mxu0 0
    %619 = vmatpush2.bf16.msra.mxu0 0
    %620 = vmatprep.mubr.bf16.mxu0 0
    %621 = vmatmul.mubr.bf16.gmra.mxu0 %v550
    %v622 = vpop.f32.mrf.mxu0
    %v623 = vadd.f32 %v435, %v622
    %v624 = vpop.f32.mrf.mxu0
    %v625 = vpop.f32.mrf.mxu0
    %v626 = vadd.f32 %v438, %v625
    %v627 = vpop.f32.mrf.mxu0
    %628 = vmatprep.mubr.bf16.mxu0 0
    %629 = vmatmul.mubr.bf16.gmra.mxu0 %v553
    %v630 = vpop.f32.mrf.mxu0
    %v631 = vadd.f32 %v443, %v630
    %v632 = vpop.f32.mrf.mxu0
    %v633 = vpop.f32.mrf.mxu0
    %v634 = vadd.f32 %v446, %v633
    %v635 = vpop.f32.mrf.mxu0
    %636 = vmatprep.mubr.bf16.mxu0 0
    %637 = vmatmul.mubr.bf16.gmra.mxu0 %v556
    %v638 = vpop.f32.mrf.mxu0
    %v639 = vadd.f32 %v451, %v638
    %v640 = vpop.f32.mrf.mxu0
    %v641 = vpop.f32.mrf.mxu0
    %v642 = vadd.f32 %v454, %v641
    %v643 = vpop.f32.mrf.mxu0
    %644 = vmatprep.mubr.bf16.mxu0 0
    %645 = vmatmul.mubr.bf16.gmra.mxu0 %v559
    %v646 = vpop.f32.mrf.mxu0
    %v647 = vadd.f32 %v459, %v646
    %v648 = vpop.f32.mrf.mxu0
    %v649 = vpop.f32.mrf.mxu0
    %v650 = vadd.f32 %v462, %v649
    %v651 = vpop.f32.mrf.mxu0
    %652 = vmatprep.mubr.bf16.mxu0 0
    %653 = vmatmul.mubr.bf16.gmra.mxu0 %v562
    %v654 = vpop.f32.mrf.mxu0
    %v655 = vadd.f32 %v467, %v654
    %v656 = vpop.f32.mrf.mxu0
    %v657 = vpop.f32.mrf.mxu0
    %v658 = vadd.f32 %v470, %v657
    %v659 = vpop.f32.mrf.mxu0
    %660 = vmatprep.mubr.bf16.mxu0 0
    %661 = vmatmul.mubr.bf16.gmra.mxu0 %v565
    %v662 = vpop.f32.mrf.mxu0
    %v663 = vadd.f32 %v475, %v662
    %v664 = vpop.f32.mrf.mxu0
    %v665 = vpop.f32.mrf.mxu0
    %v666 = vadd.f32 %v478, %v665
    %v667 = vpop.f32.mrf.mxu0
    %668 = vmatprep.mubr.bf16.mxu0 0
    %669 = vmatmul.mubr.bf16.gmra.mxu0 %v568
    %v670 = vpop.f32.mrf.mxu0
    %v671 = vadd.f32 %v483, %v670
    %v672 = vpop.f32.mrf.mxu0
    %v673 = vpop.f32.mrf.mxu0
    %v674 = vadd.f32 %v486, %v673
    %v675 = vpop.f32.mrf.mxu0
    %676 = vmatprep.mubr.bf16.mxu0 0
    %677 = vmatmul.mubr.bf16.gmra.mxu0 %v571
    %v678 = vpop.f32.mrf.mxu0
    %v679 = vadd.f32 %v491, %v678
    %v680 = vpop.f32.mrf.mxu0
    %v681 = vpop.f32.mrf.mxu0
    %v682 = vadd.f32 %v494, %v681
    %v683 = vpop.f32.mrf.mxu0
    %684 = vmatprep.mubr.bf16.mxu0 0
    %685 = vmatmul.mubr.bf16.gmra.mxu0 %v574
    %v686 = vpop.f32.mrf.mxu0
    %v687 = vadd.f32 %v499, %v686
    %v688 = vpop.f32.mrf.mxu0
    %v689 = vpop.f32.mrf.mxu0
    %v690 = vadd.f32 %v502, %v689
    %v691 = vpop.f32.mrf.mxu0
    %692 = vmatprep.mubr.bf16.mxu0 0
    %693 = vmatmul.mubr.bf16.gmra.mxu0 %v577
    %v694 = vpop.f32.mrf.mxu0
    %v695 = vadd.f32 %v507, %v694
    %v696 = vpop.f32.mrf.mxu0
    %v697 = vpop.f32.mrf.mxu0
    %v698 = vadd.f32 %v510, %v697
    %v699 = vpop.f32.mrf.mxu0
    %700 = vmatprep.mubr.bf16.mxu0 0
    %701 = vmatmul.mubr.bf16.gmra.mxu0 %v580
    %v702 = vpop.f32.mrf.mxu0
    %v703 = vadd.f32 %v515, %v702
    %v704 = vpop.f32.mrf.mxu0
    %v705 = vpop.f32.mrf.mxu0
    %v706 = vadd.f32 %v518, %v705
    %v707 = vpop.f32.mrf.mxu0
    %708 = vmatprep.mubr.bf16.mxu0 0
    %709 = vmatmul.mubr.bf16.gmra.mxu0 %v583
    %v710 = vpop.f32.mrf.mxu0
    %v711 = vadd.f32 %v523, %v710
    %v712 = vpop.f32.mrf.mxu0
    %v713 = vpop.f32.mrf.mxu0
    %v714 = vadd.f32 %v526, %v713
    %v715 = vpop.f32.mrf.mxu0
    %716 = vmatprep.mubr.bf16.mxu0 0
    %717 = vmatmul.mubr.bf16.gmra.mxu0 %v586
    %v718 = vpop.f32.mrf.mxu0
    %v719 = vadd.f32 %v531, %v718
    %v720 = vpop.f32.mrf.mxu0
    %v721 = vpop.f32.mrf.mxu0
    %v722 = vadd.f32 %v534, %v721
    %v723 = vpop.f32.mrf.mxu0
    %724 = vdwg.mxu0
    %v725 = vld [vmem:[%s4] sm:$0x1]
    %v727 = vlaneseq
    %v728 = vshrl.u32 %v727, 7
    %v729 = vsub.s32 0, %v728
    %v730 = vrot.slane %v725, %v729
    %v732 = vadd.f32 %v623, %v730
    %v733 = vadd.f32 %v626, %v730
    %v734 = vadd.f32 %v631, %v730
    %v735 = vadd.f32 %v634, %v730
    %v736 = vadd.f32 %v639, %v730
    %v737 = vadd.f32 %v642, %v730
    %v738 = vadd.f32 %v647, %v730
    %v739 = vadd.f32 %v650, %v730
    %v740 = vadd.f32 %v655, %v730
    %v741 = vadd.f32 %v658, %v730
    %v742 = vadd.f32 %v663, %v730
    %v743 = vadd.f32 %v666, %v730
    %v744 = vadd.f32 %v671, %v730
    %v745 = vadd.f32 %v674, %v730
    %v746 = vadd.f32 %v679, %v730
    %v747 = vadd.f32 %v682, %v730
    %v748 = vadd.f32 %v687, %v730
    %v749 = vadd.f32 %v690, %v730
    %v750 = vadd.f32 %v695, %v730
    %v751 = vadd.f32 %v698, %v730
    %v752 = vadd.f32 %v703, %v730
    %v753 = vadd.f32 %v706, %v730
    %v754 = vadd.f32 %v711, %v730
    %v755 = vadd.f32 %v714, %v730
    %v756 = vadd.f32 %v719, %v730
    %v757 = vadd.f32 %v722, %v730
    %758 = vst [vmem:[#allocation2] sm:$0xff] %v732
    %759 = vst [vmem:[#allocation2 + $0x8] sm:$0xff] %v733
    %760 = vst [vmem:[#allocation2 + $0x10] sm:$0xff] %v734
    %761 = vst [vmem:[#allocation2 + $0x18] sm:$0xff] %v735
    %762 = vst [vmem:[#allocation2 + $0x20] sm:$0xff] %v736
    %763 = vst [vmem:[#allocation2 + $0x28] sm:$0xff] %v737
    %764 = vst [vmem:[#allocation2 + $0x30] sm:$0xff] %v738
    %765 = vst [vmem:[#allocation2 + $0x38] sm:$0xff] %v739
    %766 = vst [vmem:[#allocation2 + $0x40] sm:$0xff] %v740
    %767 = vst [vmem:[#allocation2 + $0x48] sm:$0xff] %v741
    %768 = vst [vmem:[#allocation2 + $0x50] sm:$0xff] %v742
    %769 = vst [vmem:[#allocation2 + $0x58] sm:$0xff] %v743
    %770 = vst [vmem:[#allocation2 + $0x60] sm:$0xff] %v744
    %771 = vst [vmem:[#allocation2 + $0x68] sm:$0xff] %v745
    %772 = vst [vmem:[#allocation2 + $0x70] sm:$0xff] %v746
    %773 = vst [vmem:[#allocation2 + $0x78] sm:$0xff] %v747
    %774 = vst [vmem:[#allocation2 + $0x80] sm:$0xff] %v748
    %775 = vst [vmem:[#allocation2 + $0x88] sm:$0xff] %v749
    %776 = vst [vmem:[#allocation2 + $0x90] sm:$0xff] %v750
    %777 = vst [vmem:[#allocation2 + $0x98] sm:$0xff] %v751
    %778 = vst [vmem:[#allocation2 + $0xa0] sm:$0xff] %v752
    %779 = vst [vmem:[#allocation2 + $0xa8] sm:$0xff] %v753
    %780 = vst [vmem:[#allocation2 + $0xb0] sm:$0xff] %v754
    %781 = vst [vmem:[#allocation2 + $0xb8] sm:$0xff] %v755
    %782 = vst [vmem:[#allocation2 + $0xc0] sm:$0xff] %v756
    %783 = vst [vmem:[#allocation2 + $0xc8] sm:$0xff] %v757
    // Predicated region
    $region26: #{resnet_block_fc.1} parent=1 // pred_check
      _
    $region27: #{resnet_block_fc.1} parent=1 // pred_check_branch
      %785 = sbr.rel (0) target = $region29
    $region28: #{resnet_block_fc.1} parent=1 // pred_region
      // Predicated region
      $region30: #{resnet_block_fc.1} parent=28 // pred_check
        _
      $region31: #{resnet_block_fc.1} parent=28 // pred_check_branch
        %787 = sbr.rel (0) target = $region33
      $region32: #{resnet_block_fc.1} parent=28 // pred_region
        // Predicated region
        $region34: #{resnet_block_fc.1} parent=32 // pred_check
          _
        $region35: #{resnet_block_fc.1} parent=32 // pred_check_branch
          %789 = sbr.rel (0) target = $region37
        $region36: #{resnet_block_fc.1} parent=32 // pred_region
          // Predicated region
          $region49: #{resnet_block_fc.1} parent=36 // pred_check
            _
          $region50: #{resnet_block_fc.1} parent=36 // pred_check_branch
            %853 = sbr.rel (0) target = $region52
          $region51: #{resnet_block_fc.1} parent=36 // pred_region
            loop: start=0, step=1, limit=1
            $region53: #{resnet_block_fc.1} parent=51 // loop_pre_header
              _
            $region54: #{resnet_block_fc.1} parent=51 // loop_header
              %s855 = sphi 0, %s859
              %p856 = scmp.ge.s32.totalorder %s855, 1
              %s860 = sphi [#allocation2], [#allocation2]
              %s861 = sphi %s6, %s6
            $region55: #{resnet_block_fc.1} parent=51 // loop_header_branch
              %858 = sbr.rel (%p856) target = $region59
            $region56: #{resnet_block_fc.1} parent=51 // loop_body
              %v862 = vld [vmem:[%s860] sm:$0xff]
              %863 = vst [vmem:[%s861] sm:$0xff] %v862
              %v864 = vld [vmem:[%s860 + $0x8] sm:$0xff]
              %865 = vst [vmem:[%s861 + $0x8] sm:$0xff] %v864
              %v866 = vld [vmem:[%s860 + $0x10] sm:$0xff]
              %867 = vst [vmem:[%s861 + $0x10] sm:$0xff] %v866
              %v868 = vld [vmem:[%s860 + $0x18] sm:$0xff]
              %869 = vst [vmem:[%s861 + $0x18] sm:$0xff] %v868
              %v870 = vld [vmem:[%s860 + $0x20] sm:$0xff]
              %871 = vst [vmem:[%s861 + $0x20] sm:$0xff] %v870
              %v872 = vld [vmem:[%s860 + $0x28] sm:$0xff]
              %873 = vst [vmem:[%s861 + $0x28] sm:$0xff] %v872
              %v874 = vld [vmem:[%s860 + $0x30] sm:$0xff]
              %875 = vst [vmem:[%s861 + $0x30] sm:$0xff] %v874
              %v876 = vld [vmem:[%s860 + $0x38] sm:$0xff]
              %877 = vst [vmem:[%s861 + $0x38] sm:$0xff] %v876
              %v878 = vld [vmem:[%s860 + $0x40] sm:$0xff]
              %879 = vst [vmem:[%s861 + $0x40] sm:$0xff] %v878
              %v880 = vld [vmem:[%s860 + $0x48] sm:$0xff]
              %881 = vst [vmem:[%s861 + $0x48] sm:$0xff] %v880
              %v882 = vld [vmem:[%s860 + $0x50] sm:$0xff]
              %883 = vst [vmem:[%s861 + $0x50] sm:$0xff] %v882
              %v884 = vld [vmem:[%s860 + $0x58] sm:$0xff]
              %885 = vst [vmem:[%s861 + $0x58] sm:$0xff] %v884
              %v886 = vld [vmem:[%s860 + $0x60] sm:$0xff]
              %887 = vst [vmem:[%s861 + $0x60] sm:$0xff] %v886
              %v888 = vld [vmem:[%s860 + $0x68] sm:$0xff]
              %889 = vst [vmem:[%s861 + $0x68] sm:$0xff] %v888
              %v890 = vld [vmem:[%s860 + $0x70] sm:$0xff]
              %891 = vst [vmem:[%s861 + $0x70] sm:$0xff] %v890
              %v892 = vld [vmem:[%s860 + $0x78] sm:$0xff]
              %893 = vst [vmem:[%s861 + $0x78] sm:$0xff] %v892
              %v894 = vld [vmem:[%s860 + $0x80] sm:$0xff]
              %895 = vst [vmem:[%s861 + $0x80] sm:$0xff] %v894
              %v896 = vld [vmem:[%s860 + $0x88] sm:$0xff]
              %897 = vst [vmem:[%s861 + $0x88] sm:$0xff] %v896
              %v898 = vld [vmem:[%s860 + $0x90] sm:$0xff]
              %899 = vst [vmem:[%s861 + $0x90] sm:$0xff] %v898
              %v900 = vld [vmem:[%s860 + $0x98] sm:$0xff]
              %901 = vst [vmem:[%s861 + $0x98] sm:$0xff] %v900
              %v902 = vld [vmem:[%s860 + $0xa0] sm:$0xff]
              %903 = vst [vmem:[%s861 + $0xa0] sm:$0xff] %v902
              %v904 = vld [vmem:[%s860 + $0xa8] sm:$0xff]
              %905 = vst [vmem:[%s861 + $0xa8] sm:$0xff] %v904
              %v906 = vld [vmem:[%s860 + $0xb0] sm:$0xff]
              %907 = vst [vmem:[%s861 + $0xb0] sm:$0xff] %v906
              %v908 = vld [vmem:[%s860 + $0xb8] sm:$0xff]
              %909 = vst [vmem:[%s861 + $0xb8] sm:$0xff] %v908
              %v910 = vld [vmem:[%s860 + $0xc0] sm:$0xff]
              %911 = vst [vmem:[%s861 + $0xc0] sm:$0xff] %v910
            $region57: #{resnet_block_fc.1} parent=51 // loop_footer
              %s859 = sadd.s32 1, %s855
            $region58: #{resnet_block_fc.1} parent=51 // loop_footer_branch
              %854 = sbr.rel target = $region54
            $region59: #{resnet_block_fc.1} parent=51 // loop_exit
              _
          $region52: #{resnet_block_fc.1} parent=36 // pred_fallthru
            _
          // Predicated region
          $region60: #{resnet_block_fc.1} parent=36 // pred_check
            _
          $region61: #{resnet_block_fc.1} parent=36 // pred_check_branch
            %913 = sbr.rel target = $region63
          $region62: #{resnet_block_fc.1} parent=36 // pred_region
            _
          $region63: #{resnet_block_fc.1} parent=36 // pred_fallthru
            _
        $region37: #{resnet_block_fc.1} parent=32 // pred_fallthru
          _
        // Predicated region
        $region38: #{resnet_block_fc.1} parent=32 // pred_check
          _
        $region39: #{resnet_block_fc.1} parent=32 // pred_check_branch
          %791 = sbr.rel target = $region41
        $region40: #{resnet_block_fc.1} parent=32 // pred_region
          %s793 = ssub.s32 256, 1
          loop: start=0, step=1, limit=1
          $region42: #{resnet_block_fc.1} parent=40 // loop_pre_header
            _
          $region43: #{resnet_block_fc.1} parent=40 // loop_header
            %s795 = sphi 0, %s799
            %p796 = scmp.ge.s32.totalorder %s795, 1
            %s800 = sphi [#allocation2], [#allocation2]
            %s801 = sphi %s6, %s6
          $region44: #{resnet_block_fc.1} parent=40 // loop_header_branch
            %798 = sbr.rel (%p796) target = $region48
          $region45: #{resnet_block_fc.1} parent=40 // loop_body
            %v802 = vld [vmem:[%s800] sm:%s793]
            %803 = vst [vmem:[%s801] sm:%s793] %v802
            %v804 = vld [vmem:[%s800 + $0x8] sm:%s793]
            %805 = vst [vmem:[%s801 + $0x8] sm:%s793] %v804
            %v806 = vld [vmem:[%s800 + $0x10] sm:%s793]
            %807 = vst [vmem:[%s801 + $0x10] sm:%s793] %v806
            %v808 = vld [vmem:[%s800 + $0x18] sm:%s793]
            %809 = vst [vmem:[%s801 + $0x18] sm:%s793] %v808
            %v810 = vld [vmem:[%s800 + $0x20] sm:%s793]
            %811 = vst [vmem:[%s801 + $0x20] sm:%s793] %v810
            %v812 = vld [vmem:[%s800 + $0x28] sm:%s793]
            %813 = vst [vmem:[%s801 + $0x28] sm:%s793] %v812
            %v814 = vld [vmem:[%s800 + $0x30] sm:%s793]
            %815 = vst [vmem:[%s801 + $0x30] sm:%s793] %v814
            %v816 = vld [vmem:[%s800 + $0x38] sm:%s793]
            %817 = vst [vmem:[%s801 + $0x38] sm:%s793] %v816
            %v818 = vld [vmem:[%s800 + $0x40] sm:%s793]
            %819 = vst [vmem:[%s801 + $0x40] sm:%s793] %v818
            %v820 = vld [vmem:[%s800 + $0x48] sm:%s793]
            %821 = vst [vmem:[%s801 + $0x48] sm:%s793] %v820
            %v822 = vld [vmem:[%s800 + $0x50] sm:%s793]
            %823 = vst [vmem:[%s801 + $0x50] sm:%s793] %v822
            %v824 = vld [vmem:[%s800 + $0x58] sm:%s793]
            %825 = vst [vmem:[%s801 + $0x58] sm:%s793] %v824
            %v826 = vld [vmem:[%s800 + $0x60] sm:%s793]
            %827 = vst [vmem:[%s801 + $0x60] sm:%s793] %v826
            %v828 = vld [vmem:[%s800 + $0x68] sm:%s793]
            %829 = vst [vmem:[%s801 + $0x68] sm:%s793] %v828
            %v830 = vld [vmem:[%s800 + $0x70] sm:%s793]
            %831 = vst [vmem:[%s801 + $0x70] sm:%s793] %v830
            %v832 = vld [vmem:[%s800 + $0x78] sm:%s793]
            %833 = vst [vmem:[%s801 + $0x78] sm:%s793] %v832
            %v834 = vld [vmem:[%s800 + $0x80] sm:%s793]
            %835 = vst [vmem:[%s801 + $0x80] sm:%s793] %v834
            %v836 = vld [vmem:[%s800 + $0x88] sm:%s793]
            %837 = vst [vmem:[%s801 + $0x88] sm:%s793] %v836
            %v838 = vld [vmem:[%s800 + $0x90] sm:%s793]
            %839 = vst [vmem:[%s801 + $0x90] sm:%s793] %v838
            %v840 = vld [vmem:[%s800 + $0x98] sm:%s793]
            %841 = vst [vmem:[%s801 + $0x98] sm:%s793] %v840
            %v842 = vld [vmem:[%s800 + $0xa0] sm:%s793]
            %843 = vst [vmem:[%s801 + $0xa0] sm:%s793] %v842
            %v844 = vld [vmem:[%s800 + $0xa8] sm:%s793]
            %845 = vst [vmem:[%s801 + $0xa8] sm:%s793] %v844
            %v846 = vld [vmem:[%s800 + $0xb0] sm:%s793]
            %847 = vst [vmem:[%s801 + $0xb0] sm:%s793] %v846
            %v848 = vld [vmem:[%s800 + $0xb8] sm:%s793]
            %849 = vst [vmem:[%s801 + $0xb8] sm:%s793] %v848
            %v850 = vld [vmem:[%s800 + $0xc0] sm:%s793]
            %851 = vst [vmem:[%s801 + $0xc0] sm:%s793] %v850
          $region46: #{resnet_block_fc.1} parent=40 // loop_footer
            %s799 = sadd.s32 1, %s795
          $region47: #{resnet_block_fc.1} parent=40 // loop_footer_branch
            %794 = sbr.rel target = $region43
          $region48: #{resnet_block_fc.1} parent=40 // loop_exit
            _
        $region41: #{resnet_block_fc.1} parent=32 // pred_fallthru
          _
      $region33: #{resnet_block_fc.1} parent=28 // pred_fallthru
        _
      %914 = vnop
    $region29: #{resnet_block_fc.1} parent=1 // pred_fallthru
      _
    // Predicated region
    $region64: #{resnet_block_fc.1} parent=1 // pred_check
      _
    $region65: #{resnet_block_fc.1} parent=1 // pred_check_branch
      %916 = sbr.rel (0) target = $region67
    $region66: #{resnet_block_fc.1} parent=1 // pred_region
      _
    $region67: #{resnet_block_fc.1} parent=1 // pred_fallthru
      _

</llo_original>
